<compile_context>
chip_gen: v7x
topology: tpu7x:2x2x1
jax: 0.10.0
libtpu: 0.0.40
codegen_flags: <defaults>
</compile_context>

<pallas_src>
import math

import jax
import jax.numpy as jnp
from jax import lax
from jax.experimental import pallas as pl
from jax.experimental.pallas import tpu as pltpu


def _round_up(x, m):
    return ((x + m - 1) // m) * m


def _proj_logsoftmax_kernel(x_ref, w_ref, b_ref, o_ref, m_ref, l_ref):
    """Grid = (row_tile i, phase p, vocab_tile j).

    phase 0: online accumulation of per-row max (m) and sum-exp (l) in scratch.
    phase 1: recompute logits tile, write (logits - (m + log l)) to the output.
    """
    p = pl.program_id(1)
    j = pl.program_id(2)

    # logits tile [TM, TV]: bf16 x bf16 on the MXU, f32 accumulation,
    # contracting x dim 1 with weight dim 1 (weight is [TV, D] - no transpose).
    logits = lax.dot_general(
        x_ref[...], w_ref[...],
        dimension_numbers=(((1,), (1,)), ((), ())),
        preferred_element_type=jnp.float32)
    logits = logits + b_ref[...]          # f32 bias; padded vocab columns = -1e30

    @pl.when(p == 0)
    def _pass_stats():
        @pl.when(j == 0)
        def _init():
            m_ref[...] = jnp.full_like(m_ref, -jnp.inf)
            l_ref[...] = jnp.zeros_like(l_ref)
        m_prev = m_ref[...]
        m_new = jnp.maximum(m_prev, jnp.max(logits, axis=-1, keepdims=True))
        l_ref[...] = (l_ref[...] * jnp.exp(m_prev - m_new)
                      + jnp.sum(jnp.exp(logits - m_new), axis=-1, keepdims=True))
        m_ref[...] = m_new

    @pl.when(p == 1)
    def _pass_write():
        lse = m_ref[...] + jnp.log(l_ref[...])
        o_ref[...] = (logits - lse).astype(o_ref.dtype)


def projection_log_softmax(x, weight, bias, *, tm=256, tv=1024):
    """x: [..., d_model], weight: [vocab, d_model], bias: [vocab]
       -> log_softmax(x @ weight.T + bias, axis=-1): [..., vocab]"""
    *lead, D = x.shape
    V, D_w = weight.shape
    assert D == D_w, "weight second dim must equal d_model"

    out_dtype = x.dtype                       # match the module's output dtype
    out_bytes = jnp.dtype(out_dtype).itemsize

    x2 = x.reshape(-1, D)
    N = x2.shape[0]

    # ---- tile sizes (MXU-friendly, sized for the chip's VMEM) ----
    TM = min(tm, _round_up(N, 8))             # token tile (multiple of 8)
    TV = min(tv, _round_up(V, 128))           # vocab tile (multiple of 128)

    try:
        vmem_cap = int(pltpu.get_tpu_info().vmem_capacity_bytes)
    except Exception:
        vmem_cap = 64 << 20                   # conservative fallback (v7x size)
    budget = int(vmem_cap * 0.8)              # ~51 MiB on v7x, ~102 MiB on v5e/v6e

    def footprint(tm_, tv_):
        return (2 * tm_ * D * 2               # x tile (bf16, double-buffered)
                + 2 * tv_ * D * 2             # weight tile (bf16, double-buffered)
                + 2 * tv_ * 4                 # bias tile
                + 2 * tm_ * tv_ * out_bytes   # output tile (double-buffered)
                + 2 * tm_ * 4 * 2             # m / l scratch
                + (1 << 20))                  # slack

    while footprint(TM, TV) > budget and TV > 256:
        TV //= 2
    while footprint(TM, TV) > budget and TM > 64:
        TM //= 2

    Np = _round_up(N, TM)
    Vp = _round_up(V, TV)

    # ---- operand prep: bf16 matmul operands, f32 bias.  Pads are skipped when
    #      shapes are already tile-aligned (no extra HBM passes in that case). ----
    xc = x2.astype(jnp.bfloat16)
    if Np != N:
        xc = jnp.pad(xc, ((0, Np - N), (0, 0)))
    wc = weight.astype(jnp.bfloat16)          # [V, D]; kept untransposed
    bc = bias.astype(jnp.float32)
    if Vp != V:
        wc = jnp.pad(wc, ((0, Vp - V), (0, 0)))
        # -1e30 stays in the f32 bias (added after f32 accumulation), so padded
        # vocab columns contribute ~0 to the sum-exp and never pollute the max.
        bc = jnp.pad(bc, (0, Vp - V), constant_values=jnp.float32(-1e30))
    bc = bc.reshape(1, Vp)

    n_row, n_voc = Np // TM, Vp // TV
    grid = (n_row, 2, n_voc)

    cost = pl.CostEstimate(
        flops=2 * 2 * Np * D * Vp,                            # two matmul passes
        transcendentals=2 * Np * Vp,
        bytes_accessed=(Np * D * 2 + n_row * 2 * Vp * D * 2
                        + Vp * 4 + Np * Vp * out_bytes))

    vmem_limit = int(min(max(footprint(TM, TV) + (4 << 20), 32 << 20), budget))

    out_pad = pl.pallas_call(
        _proj_logsoftmax_kernel,
        out_shape=jax.ShapeDtypeStruct((Np, Vp), out_dtype),
        grid_spec=pltpu.PrefetchScalarGridSpec(
            num_scalar_prefetch=0,
            grid=grid,
            in_specs=[
                # x row tile: resident across both phases and all vocab tiles
                pl.BlockSpec((TM, D), lambda i, p, j: (i, 0)),
                # weight vocab tile [TV, D]
                pl.BlockSpec((TV, D), lambda i, p, j: (j, 0)),
                # bias vocab tile [1, TV]
                pl.BlockSpec((1, TV), lambda i, p, j: (0, j)),
            ],
            # phase 0 parks on block (i, 0) (never written / never flushed mid-
            # phase); phase 1 walks (i, j) and writes each block exactly once.
            out_specs=pl.BlockSpec((TM, TV), lambda i, p, j: (i, j * p)),
            scratch_shapes=[pltpu.VMEM((TM, 1), jnp.float32),   # running max
                            pltpu.VMEM((TM, 1), jnp.float32)],  # running sum-exp
        ),
        compiler_params=pltpu.CompilerParams(
            dimension_semantics=("parallel", "arbitrary", "arbitrary"),
            vmem_limit_bytes=vmem_limit),
        cost_estimate=cost,
    )(xc, wc, bc)

    out = out_pad
    if Np != N or Vp != V:                    # no-op for tile-aligned shapes
        out = out[:N, :V]
    return out.reshape(*lead, V)


if __name__ == "__main__":
    d_model, vocab_size = 32, 50
    B, S = 2, 8

    key = jax.random.PRNGKey(0)
    k_x, k_w, k_b = jax.random.split(key, 3)

    # nn.Linear default init: U(-1/sqrt(in_features), 1/sqrt(in_features))
    bound = 1.0 / math.sqrt(d_model)
    weight = jax.random.uniform(k_w, (vocab_size, d_model),
                                minval=-bound, maxval=bound, dtype=jnp.float32)
    bias = jax.random.uniform(k_b, (vocab_size,),
                              minval=-bound, maxval=bound, dtype=jnp.float32)
    x = jax.random.normal(k_x, (B, S, d_model), dtype=jnp.float32)

    out = projection_log_softmax(x, weight, bias)
    out = jax.block_until_ready(out)
    assert out.shape == (B, S, vocab_size)

    # reference matching the kernel's numerics (bf16 operands, f32 accumulate)
    logits_bf = jnp.einsum("bsd,vd->bsv",
                           x.astype(jnp.bfloat16), weight.astype(jnp.bfloat16),
                           preferred_element_type=jnp.float32) + bias
    ref_bf = jax.nn.log_softmax(logits_bf, axis=-1)
    assert jnp.allclose(out, ref_bf, atol=2e-3, rtol=2e-3), "mismatch vs bf16 reference"

    # sanity check against the full-f32 module semantics (looser, bf16 rounding)
    logits_f32 = jnp.einsum("bsd,vd->bsv", x, weight) + bias
    ref_f32 = jax.nn.log_softmax(logits_f32, axis=-1)
    assert jnp.allclose(out, ref_f32, atol=5e-2, rtol=5e-2), "mismatch vs f32 reference"

    print("KERNEL_OK")
</pallas_src>

<mosaic_0001>
module attributes {stable_mosaic.version = 11 : i64} {
  func.func @_proj_logsoftmax_kernel(%arg0: i32, %arg1: i32, %arg2: i32, %arg3: memref<16x32xbf16, #tpu.memory_space<vmem>>, %arg4: memref<128x32xbf16, #tpu.memory_space<vmem>>, %arg5: memref<1x128xf32, #tpu.memory_space<vmem>>, %arg6: memref<16x128xf32, #tpu.memory_space<vmem>>, %arg7: memref<16x1xf32, #tpu.memory_space<vmem>>, %arg8: memref<16x1xf32, #tpu.memory_space<vmem>>) attributes {dimension_semantics = [#tpu.dimension_semantics<parallel>, #tpu.dimension_semantics<arbitrary>, #tpu.dimension_semantics<arbitrary>], iteration_bounds = array<i64: 1, 2, 1>, scalar_prefetch = 0 : i64, scratch_operands = 2 : i64, tpu.core_type = #tpu.core_type<tc>, window_params = [{transform_indices = @transform_0, window_bounds = array<i64: 16, 32>}, {transform_indices = @transform_1, window_bounds = array<i64: 128, 32>}, {transform_indices = @transform_2, window_bounds = array<i64: 1, 128>}, {transform_indices = @transform_3, window_bounds = array<i64: 16, 128>}]} {
    %c0 = arith.constant 0 : index
    %c0_0 = arith.constant 0 : index
    %0 = vector.load %arg3[%c0, %c0_0] : memref<16x32xbf16, #tpu.memory_space<vmem>>, vector<16x32xbf16>
    %c0_1 = arith.constant 0 : index
    %c0_2 = arith.constant 0 : index
    %1 = vector.load %arg4[%c0_1, %c0_2] : memref<128x32xbf16, #tpu.memory_space<vmem>>, vector<128x32xbf16>
    %cst = arith.constant dense<0.000000e+00> : vector<16x128xf32>
    %2 = tpu.matmul %0, %1, %cst {dimension_numbers = #tpu.dot_dimension_numbers<[1], [1], [0], [0], [0, 0, 1, 0], [], []>} : vector<16x32xbf16>, vector<128x32xbf16>, vector<16x128xf32> -> vector<16x128xf32>
    %c0_3 = arith.constant 0 : index
    %c0_4 = arith.constant 0 : index
    %3 = vector.load %arg5[%c0_3, %c0_4] : memref<1x128xf32, #tpu.memory_space<vmem>>, vector<1x128xf32>
    %4 = vector.broadcast %3 : vector<1x128xf32> to vector<16x128xf32>
    %5 = arith.addf %2, %4 : vector<16x128xf32>
    %c0_i32 = arith.constant 0 : i32
    %6 = arith.cmpi eq, %arg1, %c0_i32 : i32
    %7 = arith.extui %6 : i1 to i32
    %c0_i32_5 = arith.constant 0 : i32
    %8 = arith.cmpi ne, %7, %c0_i32_5 : i32
    scf.if %8 {
      %c0_i32_7 = arith.constant 0 : i32
      %12 = arith.cmpi eq, %arg2, %c0_i32_7 : i32
      %13 = arith.extui %12 : i1 to i32
      %c0_i32_8 = arith.constant 0 : i32
      %14 = arith.cmpi ne, %13, %c0_i32_8 : i32
      scf.if %14 {
        %cst_19 = arith.constant 0xFF800000 : f32
        %31 = vector.broadcast %cst_19 : f32 to vector<16x1xf32>
        %c0_20 = arith.constant 0 : index
        %c0_21 = arith.constant 0 : index
        %32 = vector.load %arg7[%c0_20, %c0_21] : memref<16x1xf32, #tpu.memory_space<vmem>>, vector<16x1xf32>
        tpu.vector_store %arg7[%c0_20, %c0_21], %31 {strides = array<i32>} : memref<16x1xf32, #tpu.memory_space<vmem>>, vector<16x1xf32>,
        %cst_22 = arith.constant 0.000000e+00 : f32
        %33 = vector.broadcast %cst_22 : f32 to vector<16x1xf32>
        %c0_23 = arith.constant 0 : index
        %c0_24 = arith.constant 0 : index
        %34 = vector.load %arg8[%c0_23, %c0_24] : memref<16x1xf32, #tpu.memory_space<vmem>>, vector<16x1xf32>
        tpu.vector_store %arg8[%c0_23, %c0_24], %33 {strides = array<i32>} : memref<16x1xf32, #tpu.memory_space<vmem>>, vector<16x1xf32>,
      } else {
      }
      %c0_9 = arith.constant 0 : index
      %c0_10 = arith.constant 0 : index
      %15 = vector.load %arg7[%c0_9, %c0_10] : memref<16x1xf32, #tpu.memory_space<vmem>>, vector<16x1xf32>
      %cst_11 = arith.constant dense<0xFF800000> : vector<16xf32>
      %16 = vector.multi_reduction <maximumf>, %5, %cst_11 [1] : vector<16x128xf32> to vector<16xf32>
      %17 = vector.shape_cast %16 : vector<16xf32> to vector<16x1xf32>
      %18 = arith.maximumf %15, %17 : vector<16x1xf32>
      %c0_12 = arith.constant 0 : index
      %c0_13 = arith.constant 0 : index
      %19 = vector.load %arg8[%c0_12, %c0_13] : memref<16x1xf32, #tpu.memory_space<vmem>>, vector<16x1xf32>
      %20 = arith.subf %15, %18 : vector<16x1xf32>
      %21 = math.exp %20 : vector<16x1xf32>
      %22 = arith.mulf %19, %21 : vector<16x1xf32>
      %23 = vector.broadcast %18 : vector<16x1xf32> to vector<16x128xf32>
      %24 = arith.subf %5, %23 : vector<16x128xf32>
      %25 = math.exp %24 : vector<16x128xf32>
      %cst_14 = arith.constant dense<0.000000e+00> : vector<16xf32>
      %26 = vector.multi_reduction <add>, %25, %cst_14 [1] : vector<16x128xf32> to vector<16xf32>
      %27 = vector.shape_cast %26 : vector<16xf32> to vector<16x1xf32>
      %28 = arith.addf %22, %27 : vector<16x1xf32>
      %c0_15 = arith.constant 0 : index
      %c0_16 = arith.constant 0 : index
      %29 = vector.load %arg8[%c0_15, %c0_16] : memref<16x1xf32, #tpu.memory_space<vmem>>, vector<16x1xf32>
      tpu.vector_store %arg8[%c0_15, %c0_16], %28 {strides = array<i32>} : memref<16x1xf32, #tpu.memory_space<vmem>>, vector<16x1xf32>,
      %c0_17 = arith.constant 0 : index
      %c0_18 = arith.constant 0 : index
      %30 = vector.load %arg7[%c0_17, %c0_18] : memref<16x1xf32, #tpu.memory_space<vmem>>, vector<16x1xf32>
      tpu.vector_store %arg7[%c0_17, %c0_18], %18 {strides = array<i32>} : memref<16x1xf32, #tpu.memory_space<vmem>>, vector<16x1xf32>,
    } else {
    }
    %c1_i32 = arith.constant 1 : i32
    %9 = arith.cmpi eq, %arg1, %c1_i32 : i32
    %10 = arith.extui %9 : i1 to i32
    %c0_i32_6 = arith.constant 0 : i32
    %11 = arith.cmpi ne, %10, %c0_i32_6 : i32
    scf.if %11 {
      %c0_7 = arith.constant 0 : index
      %c0_8 = arith.constant 0 : index
      %12 = vector.load %arg7[%c0_7, %c0_8] : memref<16x1xf32, #tpu.memory_space<vmem>>, vector<16x1xf32>
      %c0_9 = arith.constant 0 : index
      %c0_10 = arith.constant 0 : index
      %13 = vector.load %arg8[%c0_9, %c0_10] : memref<16x1xf32, #tpu.memory_space<vmem>>, vector<16x1xf32>
      %14 = math.log %13 : vector<16x1xf32>
      %15 = arith.addf %12, %14 : vector<16x1xf32>
      %16 = vector.broadcast %15 : vector<16x1xf32> to vector<16x128xf32>
      %17 = arith.subf %5, %16 : vector<16x128xf32>
      %c0_11 = arith.constant 0 : index
      %c0_12 = arith.constant 0 : index
      %18 = vector.load %arg6[%c0_11, %c0_12] : memref<16x128xf32, #tpu.memory_space<vmem>>, vector<16x128xf32>
      tpu.vector_store %arg6[%c0_11, %c0_12], %17 {strides = array<i32>} : memref<16x128xf32, #tpu.memory_space<vmem>>, vector<16x128xf32>,
    } else {
    }
    return
  }
  func.func @transform_0(%arg0: i32, %arg1: i32, %arg2: i32) -> (i32, i32) {
    %c0_i32 = arith.constant 0 : i32
    %c0_i32_0 = arith.constant 0 : i32
    return %arg0, %c0_i32 : i32, i32
  }
  func.func @transform_1(%arg0: i32, %arg1: i32, %arg2: i32) -> (i32, i32) {
    %c0_i32 = arith.constant 0 : i32
    %c0_i32_0 = arith.constant 0 : i32
    return %arg2, %c0_i32 : i32, i32
  }
  func.func @transform_2(%arg0: i32, %arg1: i32, %arg2: i32) -> (i32, i32) {
    %c0_i32 = arith.constant 0 : i32
    %c0_i32_0 = arith.constant 0 : i32
    return %c0_i32, %arg2 : i32, i32
  }
  func.func @transform_3(%arg0: i32, %arg1: i32, %arg2: i32) -> (i32, i32) {
    %0 = arith.muli %arg2, %arg1 : i32
    %c0_i32 = arith.constant 0 : i32
    return %arg0, %0 : i32, i32
  }
}

</mosaic_0001>

<llo_original>
// kernel: tpu_custom_call.1
$region0: #{tpu_custom_call.1}
  #allocation0 [shape = 'u32[]', space=smem, size = 0x4, offset = 0x4, fixed_abs, tag = 'smem constant byte address 0x4 - core index']
  #allocation1 [shape = 'u32[144,128]{1,0:T(1,128)}', space=vmem, size = 0x12000, scoped, tag = 'internal scratch']
  #allocation2 [shape = 'f32[16,1]{1,0:T(8,128)}', space=vmem, size = 0x2000, scoped, tag = 'scratch operand']
  #allocation3 [shape = 'f32[16,1]{1,0:T(8,128)}', space=vmem, size = 0x2000, scoped, tag = 'scratch operand']
  %s0 = inlined_call_operand.vmem [shape: bf16[16,32], index: 0, kind: input, shape index: {}]
  %s1 = inlined_call_operand.vmem [shape: bf16[128,32], index: 1, kind: input, shape index: {}]
  %s2 = inlined_call_operand.vmem [shape: f32[1,128], index: 2, kind: input, shape index: {}]
  %s3 = inlined_call_operand.hbm [shape: f32[16,128], index: 3, kind: output, shape index: {}]
  %s4 = sld [smem:[#allocation0]]
  $region57: #{tpu_custom_call.1} parent=0
    _
  %s6 = ssub.s32 1, %s4
  %s7 = scalar_select 0, %s6, %s4
  $region1: #{tpu_custom_call.1} parent=0
    #allocation4 [shape = 'u8[16384]{0}', space=vmem, size = 0x4000, scoped, tag = 'output window, operand 0']
    #allocation5 [shape = 's32[2]{0}', space=sflag, size = 0x8, scoped, tag = 'scoped memory for tpu_custom_call.1']
    %8 = vsyncpa [#allocation5], 0
    %s9 = scalar_lea.sflag [#allocation5], 1
    %10 = vsyncpa %s9, 0
    loop: start=0, step=1, limit=4
    $region2: #{tpu_custom_call.1} parent=1 // loop_pre_header
      _
    $region3: #{tpu_custom_call.1} parent=1 // loop_header
      %s12 = sphi 0, %s16
      %p13 = scmp.ge.s32.totalorder %s12, 4
      %s19 = sphi 0, %s38
      %s20 = sphi 0, %s34
      %s21 = sphi 0, %s30
      %s22 = sphi 0, %s19
      %s23 = sphi 0, %s20
      %s24 = sphi 0, %s21
      %s25 = sphi 0, %s22
      %s26 = sphi 0, %s23
      %s27 = sphi 0, %s24
      %s41 = sphi 0, %s43
      %s44 = sphi 0, %s41
      %s45 = sphi 0, %s44
      %s61 = sphi 0, %s45
      %s67 = sphi 0, %s69
      %s70 = sphi 0, %s67
      %s71 = sphi 0, %s70
      %s87 = sphi 0, %s71
      %s93 = sphi 0, %s95
      %s96 = sphi 0, %s93
      %s97 = sphi 0, %s96
      %s113 = sphi 0, %s97
      %s123 = sphi 0, %s125
      %s126 = sphi 0, %s123
      %s127 = sphi 0, %s126
      %s143 = sphi 0, %s127
    $region4: #{tpu_custom_call.1} parent=1 // loop_header_branch
      %15 = sbr.rel (%p13) target = $region8
    $region5: #{tpu_custom_call.1} parent=1 // loop_body
      %s17 = ssub.s32 %s12, 1
      %s18 = ssub.s32 %s12, 2
      %s28 = sadd.s32 1, %s21
      %p29 = scmp.ge.s32.totalorder %s28, 1
      %s30 = scalar_select %p29, 0, %s28
      %s31 = sadd.s32 1, %s20
      %s32 = scalar_select %p29, %s31, %s20
      %p33 = scmp.ge.s32.totalorder %s32, 2
      %s34 = scalar_select %p33, 0, %s32
      %s35 = sadd.s32 1, %s19
      %s36 = scalar_select %p33, %s35, %s19
      %p37 = scmp.ge.s32.totalorder %s36, 1
      %s38 = scalar_select %p37, 0, %s36
      %s39 = ssub.s32 %s19, %s38
      %p40 = scmp.eq.s32.totalorder %s39, 0
      %s42 = sadd.s32 %s41, 1
      %s43 = scalar_select %p40, %s41, %s42
      %p46 = pneg %p40
      %p47 = scmp.eq.s32.totalorder %s12, 1
      %p48 = por %p46, %p47
      %p49 = scmp.ne.s32.totalorder %s41, %s44
      %p50 = scmp.eq.s32.totalorder %s12, 0
      %p51 = por %p49, %p50
      %p52 = scmp.ne.s32.totalorder %s41, %s44
      %p53 = scmp.eq.s32.totalorder %s17, 1
      %p54 = por %p52, %p53
      %p55 = scmp.ne.s32.totalorder %s44, %s45
      %p56 = scmp.eq.s32.totalorder %s17, 0
      %p57 = por %p55, %p56
      %p58 = scmp.ne.s32.totalorder %s44, %s45
      %p59 = scmp.eq.s32.totalorder %s18, 1
      %p60 = por %p58, %p59
      %p62 = scmp.ne.s32.totalorder %s45, %s61
      %p63 = scmp.eq.s32.totalorder %s18, 0
      %p64 = por %p62, %p63
      %s65 = ssub.s32 %s21, %s30
      %p66 = scmp.eq.s32.totalorder %s65, 0
      %s68 = sadd.s32 %s67, 1
      %s69 = scalar_select %p66, %s67, %s68
      %p72 = pneg %p66
      %p73 = scmp.eq.s32.totalorder %s12, 1
      %p74 = por %p72, %p73
      %p75 = scmp.ne.s32.totalorder %s67, %s70
      %p76 = scmp.eq.s32.totalorder %s12, 0
      %p77 = por %p75, %p76
      %p78 = scmp.ne.s32.totalorder %s67, %s70
      %p79 = scmp.eq.s32.totalorder %s17, 1
      %p80 = por %p78, %p79
      %p81 = scmp.ne.s32.totalorder %s70, %s71
      %p82 = scmp.eq.s32.totalorder %s17, 0
      %p83 = por %p81, %p82
      %p84 = scmp.ne.s32.totalorder %s70, %s71
      %p85 = scmp.eq.s32.totalorder %s18, 1
      %p86 = por %p84, %p85
      %p88 = scmp.ne.s32.totalorder %s71, %s87
      %p89 = scmp.eq.s32.totalorder %s18, 0
      %p90 = por %p88, %p89
      %s91 = ssub.s32 %s21, %s30
      %p92 = scmp.eq.s32.totalorder %s91, 0
      %s94 = sadd.s32 %s93, 1
      %s95 = scalar_select %p92, %s93, %s94
      %p98 = pneg %p92
      %p99 = scmp.eq.s32.totalorder %s12, 1
      %p100 = por %p98, %p99
      %p101 = scmp.ne.s32.totalorder %s93, %s96
      %p102 = scmp.eq.s32.totalorder %s12, 0
      %p103 = por %p101, %p102
      %p104 = scmp.ne.s32.totalorder %s93, %s96
      %p105 = scmp.eq.s32.totalorder %s17, 1
      %p106 = por %p104, %p105
      %p107 = scmp.ne.s32.totalorder %s96, %s97
      %p108 = scmp.eq.s32.totalorder %s17, 0
      %p109 = por %p107, %p108
      %p110 = scmp.ne.s32.totalorder %s96, %s97
      %p111 = scmp.eq.s32.totalorder %s18, 1
      %p112 = por %p110, %p111
      %p114 = scmp.ne.s32.totalorder %s97, %s113
      %p115 = scmp.eq.s32.totalorder %s18, 0
      %p116 = por %p114, %p115
      %s117 = smul.u32 %s21, %s20
      %s118 = smul.u32 %s30, %s34
      %s119 = ssub.s32 %s19, %s38
      %s120 = ssub.s32 %s117, %s118
      %s121 = sor.u32 %s119, %s120
      %p122 = scmp.eq.s32.totalorder %s121, 0
      %s124 = sadd.s32 %s123, 1
      %s125 = scalar_select %p122, %s123, %s124
      %p128 = pneg %p122
      %p129 = scmp.eq.s32.totalorder %s12, 1
      %p130 = por %p128, %p129
      %p131 = scmp.ne.s32.totalorder %s123, %s126
      %p132 = scmp.eq.s32.totalorder %s12, 0
      %p133 = por %p131, %p132
      %p134 = scmp.ne.s32.totalorder %s123, %s126
      %p135 = scmp.eq.s32.totalorder %s17, 1
      %p136 = por %p134, %p135
      %p137 = scmp.ne.s32.totalorder %s126, %s127
      %p138 = scmp.eq.s32.totalorder %s17, 0
      %p139 = por %p137, %p138
      %p140 = scmp.ne.s32.totalorder %s126, %s127
      %p141 = scmp.eq.s32.totalorder %s18, 1
      %p142 = por %p140, %p141
      %p144 = scmp.ne.s32.totalorder %s127, %s143
      %p145 = scmp.eq.s32.totalorder %s18, 0
      %p146 = por %p144, %p145
      %p147 = scmp.le.s32.totalorder 1, %s12
      %p148 = scmp.lt.s32.totalorder %s12, 3
      %p149 = pnand %p147, %p148
      %p150 = pneg %p149
      // Predicated region
      $region9: #{tpu_custom_call.1} parent=5 // pred_check
        _
      $region10: #{tpu_custom_call.1} parent=5 // pred_check_branch
        %152 = sbr.rel (%p149) target = $region12
      $region11: #{tpu_custom_call.1} parent=5 // pred_region
        %s153 = ssub.s32 %s12, 1
        // Predicated region
        $region13: #{tpu_custom_call.1} parent=11 // pred_check
          %p154 = pneg %p57
        $region14: #{tpu_custom_call.1} parent=11 // pred_check_branch
          %156 = sbr.rel (%p154) target = $region16
        $region15: #{tpu_custom_call.1} parent=11 // pred_region
          %s157 = smul.u32 2, %s22
          %p158 = scmp.lt.s32.totalorder %s157, 1
          %s159 = scalar_select %p158, %s157, 1
          %s160 = smul.addr %s159, 4
          %s161 = scalar_lea.vmem %s0, %s160
          %s162 = smul.u32 2, %s22
        $region16: #{tpu_custom_call.1} parent=11 // pred_fallthru
          _
        // Predicated region
        $region17: #{tpu_custom_call.1} parent=11 // pred_check
          %p163 = pneg %p83
        $region18: #{tpu_custom_call.1} parent=11 // pred_check_branch
          %165 = sbr.rel (%p163) target = $region20
        $region19: #{tpu_custom_call.1} parent=11 // pred_region
          %s166 = smul.u32 16, %s24
          %p167 = scmp.lt.s32.totalorder %s166, 15
          %s168 = scalar_select %p167, %s166, 15
          %s169 = smul.addr %s168, 4
          %s170 = scalar_lea.vmem %s1, %s169
          %s171 = smul.u32 16, %s24
        $region20: #{tpu_custom_call.1} parent=11 // pred_fallthru
          _
        // Predicated region
        $region21: #{tpu_custom_call.1} parent=11 // pred_check
          %p172 = pneg %p109
        $region22: #{tpu_custom_call.1} parent=11 // pred_check_branch
          %174 = sbr.rel (%p172) target = $region24
        $region23: #{tpu_custom_call.1} parent=11 // pred_region
          %p175 = scmp.lt.s32.totalorder %s24, 0
          %s176 = scalar_select %p175, %s24, 0
          %s177 = scalar_lea.vmem %s2, %s176
        $region24: #{tpu_custom_call.1} parent=11 // pred_fallthru
          _
      $region12: #{tpu_custom_call.1} parent=5 // pred_fallthru
        _
      %p178 = scmp.lt.s32.totalorder %s12, 2
      // Predicated region
      $region25: #{tpu_custom_call.1} parent=5 // pred_check
        %p179 = pneg %p178
      $region26: #{tpu_custom_call.1} parent=5 // pred_check_branch
        %181 = sbr.rel (%p179) target = $region28
      $region27: #{tpu_custom_call.1} parent=5 // pred_region
        _
      $region28: #{tpu_custom_call.1} parent=5 // pred_fallthru
        _
      %p182 = scmp.le.s32.totalorder 1, %s12
      %p183 = scmp.lt.s32.totalorder %s12, 3
      %p184 = pnand %p182, %p183
      %p185 = pneg %p184
      // Predicated region
      $region29: #{tpu_custom_call.1} parent=5 // pred_check
        _
      $region30: #{tpu_custom_call.1} parent=5 // pred_check_branch
        %187 = sbr.rel (%p184) target = $region32
      $region31: #{tpu_custom_call.1} parent=5 // pred_region
        %s188 = ssub.s32 %s12, 1
        %s189 = smul.u32 2, %s22
        %p190 = scmp.lt.s32.totalorder %s189, 1
        %s191 = scalar_select %p190, %s189, 1
        %s192 = smul.addr %s191, 4
        %s193 = scalar_lea.vmem %s0, %s192
        %p194 = pneg %p57
        %p195 = pneg %p54
        %s196 = smul.u32 16, %s24
        %p197 = scmp.lt.s32.totalorder %s196, 15
        %s198 = scalar_select %p197, %s196, 15
        %s199 = smul.addr %s198, 4
        %s200 = scalar_lea.vmem %s1, %s199
        %p201 = pneg %p83
        %p202 = pneg %p80
        %p203 = scmp.lt.s32.totalorder %s24, 0
        %s204 = scalar_select %p203, %s24, 0
        %s205 = scalar_lea.vmem %s2, %s204
        %p206 = pneg %p109
        %p207 = pneg %p106
        %p208 = pneg %p139
        %p209 = pneg %p136
        %s210 = sand.u32 %s126, 1
        %s211 = scalar_lea.sflag [#allocation5], %s210
        %s212 = sand.u32 %s126, 1
        %s213 = smul.addr %s212, 16
        %s214 = scalar_lea.vmem [#allocation4], %s213
        %s215 = smul.u32 2, %s22
        %p216 = scmp.lt.s32.totalorder %s215, 1
        %s217 = scalar_select %p216, %s215, 1
        %s218 = smul.addr %s217, 4
        %s219 = scalar_lea.vmem %s0, %s218
        %s220 = smul.u32 2, %s22
        %s221 = smul.u32 16, %s24
        %p222 = scmp.lt.s32.totalorder %s221, 15
        %s223 = scalar_select %p222, %s221, 15
        %s224 = smul.addr %s223, 4
        %s225 = scalar_lea.vmem %s1, %s224
        %s226 = smul.u32 16, %s24
        %p227 = scmp.lt.s32.totalorder %s24, 0
        %s228 = scalar_select %p227, %s24, 0
        %s229 = scalar_lea.vmem %s2, %s228
        %s230 = smul.u32 %s24, %s23
        %s231 = smul.u32 2, %s22
        %v233 = vld [vmem:[%s219] sm:$0xf]
        %v234 = vld [vmem:[%s219 + $0x4] sm:$0xf]
        %v235 = vld [vmem:[%s225] sm:$0xf]
        %v236 = vld [vmem:[%s225 + $0x4] sm:$0xf]
        %v237 = vld [vmem:[%s225 + $0x8] sm:$0xf]
        %v238 = vld [vmem:[%s225 + $0xc] sm:$0xf]
        %v239 = vld [vmem:[%s225 + $0x10] sm:$0xf]
        %v240 = vld [vmem:[%s225 + $0x14] sm:$0xf]
        %v241 = vld [vmem:[%s225 + $0x18] sm:$0xf]
        %v242 = vld [vmem:[%s225 + $0x1c] sm:$0xf]
        %v243 = vld [vmem:[%s225 + $0x20] sm:$0xf]
        %v244 = vld [vmem:[%s225 + $0x24] sm:$0xf]
        %v245 = vld [vmem:[%s225 + $0x28] sm:$0xf]
        %v246 = vld [vmem:[%s225 + $0x2c] sm:$0xf]
        %v247 = vld [vmem:[%s225 + $0x30] sm:$0xf]
        %v248 = vld [vmem:[%s225 + $0x34] sm:$0xf]
        %v249 = vld [vmem:[%s225 + $0x38] sm:$0xf]
        %v250 = vld [vmem:[%s225 + $0x3c] sm:$0xf]
        %v251 = vld [vmem:[%s229] sm:$0x1]
        %v253 = vlaneseq
        %v254 = vshrl.u32 %v253, 7
        %v255 = vsub.s32 0, %v254
        %v256 = vrot.slane %v251, %v255
        %v260 = vunpack.c.l.b16 %v233
        %v261 = vunpack.c.l.b16 %v234
        %v262 = vpack.c.b16 %v261, %v260
        %v279 = vunpack.c.l.b16 %v235
        %v280 = vunpack.c.l.b16 %v236
        %v281 = vunpack.c.l.b16 %v237
        %v282 = vunpack.c.l.b16 %v238
        %v283 = vunpack.c.l.b16 %v239
        %v284 = vunpack.c.l.b16 %v240
        %v285 = vunpack.c.l.b16 %v241
        %v286 = vunpack.c.l.b16 %v242
        %v287 = vunpack.c.l.b16 %v243
        %v288 = vunpack.c.l.b16 %v244
        %v289 = vunpack.c.l.b16 %v245
        %v290 = vunpack.c.l.b16 %v246
        %v291 = vunpack.c.l.b16 %v247
        %v292 = vunpack.c.l.b16 %v248
        %v293 = vunpack.c.l.b16 %v249
        %v294 = vunpack.c.l.b16 %v250
        %v295 = vpack.c.b16 %v280, %v279
        %v296 = vpack.c.b16 %v282, %v281
        %v297 = vpack.c.b16 %v284, %v283
        %v298 = vpack.c.b16 %v286, %v285
        %v299 = vpack.c.b16 %v288, %v287
        %v300 = vpack.c.b16 %v290, %v289
        %v301 = vpack.c.b16 %v292, %v291
        %v302 = vpack.c.b16 %v294, %v293
        %vm303 = vcmask 261120
        %v305 = vsel %vm303, %v262, 0
        %v308 = vsel %vm303, %v295, 0
        %v311 = vsel %vm303, %v296, 0
        %v314 = vsel %vm303, %v297, 0
        %v317 = vsel %vm303, %v298, 0
        %v320 = vsel %vm303, %v299, 0
        %v323 = vsel %vm303, %v300, 0
        %v326 = vsel %vm303, %v301, 0
        %v329 = vsel %vm303, %v302, 0
        %331 = vmatprep.subr.bf16.mxu0 0
        %332 = vmatpush1.bf16.xpose.msra.mxu0 %v308
        %333 = vmatprep.subr.bf16.mxu0 0
        %334 = vmatpush1.bf16.xpose.msra.mxu0 %v311
        %335 = vmatprep.subr.bf16.mxu0 0
        %336 = vmatpush1.bf16.xpose.msra.mxu0 %v314
        %337 = vmatprep.subr.bf16.mxu0 0
        %338 = vmatpush1.bf16.xpose.msra.mxu0 %v317
        %339 = vmatprep.subr.bf16.mxu0 0
        %340 = vmatpush1.bf16.xpose.msra.mxu0 %v320
        %341 = vmatprep.subr.bf16.mxu0 0
        %342 = vmatpush1.bf16.xpose.msra.mxu0 %v323
        %343 = vmatprep.subr.bf16.mxu0 0
        %344 = vmatpush1.bf16.xpose.msra.mxu0 %v326
        %345 = vmatprep.subr.bf16.mxu0 0
        %346 = vmatpush1.bf16.xpose.msra.mxu0 %v329
        %347 = vmatprep.subr.bf16.mxu0 0
        %348 = vmatpush1.bf16.xpose.msra.mxu0 0
        %349 = vmatprep.subr.bf16.mxu0 0
        %350 = vmatpush1.bf16.xpose.msra.mxu0 0
        %351 = vmatprep.subr.bf16.mxu0 0
        %352 = vmatpush1.bf16.xpose.msra.mxu0 0
        %353 = vmatprep.subr.bf16.mxu0 0
        %354 = vmatpush1.bf16.xpose.msra.mxu0 0
        %355 = vmatprep.subr.bf16.mxu0 0
        %356 = vmatpush1.bf16.xpose.msra.mxu0 0
        %357 = vmatprep.subr.bf16.mxu0 0
        %358 = vmatpush1.bf16.xpose.msra.mxu0 0
        %359 = vmatprep.subr.bf16.mxu0 0
        %360 = vmatpush1.bf16.xpose.msra.mxu0 0
        %361 = vmatprep.subr.bf16.mxu0 0
        %362 = vmatpush1.bf16.xpose.msra.mxu0 0
        %363 = vmatprep.mubr.bf16.mxu0 0
        %364 = vmatmul.mubr.bf16.gmra.mrb[0].mxu0 %v305
        %v365 = vpop.f32.mrb[0].mxu0
        %v366 = vadd.f32 %v256, %v365
        %v367 = vpop.f32.mrb[0].mxu0
        %v368 = vpop.f32.mrb[0].mxu0
        %v369 = vadd.f32 %v256, %v368
        %v370 = vpop.f32.mrb[0].mxu0
        %371 = vdwg.mxu0
        %p372 = scmp.eq.s32.totalorder %s23, 0
        // Predicated region
        $region33: #{tpu_custom_call.1} parent=31 // pred_check
          %p373 = pneg %p372
        $region34: #{tpu_custom_call.1} parent=31 // pred_check_branch
          %375 = sbr.rel (%p373) target = $region36
        $region35: #{tpu_custom_call.1} parent=31 // pred_region
          %p376 = scmp.eq.s32.totalorder %s24, 0
          // Predicated region
          $region37: #{tpu_custom_call.1} parent=35 // pred_check
            %p377 = pneg %p376
          $region38: #{tpu_custom_call.1} parent=35 // pred_check_branch
            %379 = sbr.rel (%p377) target = $region40
          $region39: #{tpu_custom_call.1} parent=35 // pred_region
            %vm380 = vcmask 7168
            %381 = vst.msk [vmem:[#allocation2] sm:$0xff] %vm380, -inf
            %382 = vst.msk [vmem:[#allocation2 + $0x8] sm:$0xff] %vm380, -inf
            %383 = vst.msk [vmem:[#allocation3] sm:$0xff] %vm380, 0.0
            %384 = vst.msk [vmem:[#allocation3 + $0x8] sm:$0xff] %vm380, 0.0
          $region40: #{tpu_custom_call.1} parent=35 // pred_fallthru
            _
          %v385 = vld [vmem:[#allocation2] sm:$0xff]
          %v386 = vld [vmem:[#allocation2 + $0x8] sm:$0xff]
          %387 = vmax.xlane.f32.xlu0 %v366
          %v388 = vpop.xlane.xlu0 %387
          %389 = vmax.xlane.f32.xlu0 %v369
          %v390 = vpop.xlane.xlu0 %389
          %v391 = vmax.f32 %v385, %v388
          %v392 = vmax.f32 %v386, %v390
          %v393 = vld [vmem:[#allocation3] sm:$0xff]
          %v394 = vld [vmem:[#allocation3 + $0x8] sm:$0xff]
          %v395 = vsub.f32 %v385, %v391
          %v396 = vsub.f32 %v386, %v392
          %v397 = vmul.f32 %v395, 1.442695
          %v398 = vpow.pop %v397
          %v399 = vmul.f32 %v396, 1.442695
          %v400 = vpow.pop %v399
          %v401 = vmul.f32 %v393, %v398
          %v402 = vmul.f32 %v394, %v400
          %404 = vset.pattern.permute.xlu0 0
          %405 = vperm.xlu0 %404, %v391
          %v406 = vpop.permute.xlu0 %405
          %409 = vset.pattern.permute.xlu0 0
          %410 = vperm.xlu0 %409, %v392
          %v411 = vpop.permute.xlu0 %410
          %v413 = vsub.f32 %v366, %v406
          %v414 = vsub.f32 %v369, %v411
          %v415 = vmul.f32 %v413, 1.442695
          %v416 = vpow.pop %v415
          %v417 = vmul.f32 %v414, 1.442695
          %v418 = vpow.pop %v417
          %419 = vadd.xlane.f32.xlu0 %v416
          %v420 = vpop.xlane.xlu0 %419
          %421 = vadd.xlane.f32.xlu0 %v418
          %v422 = vpop.xlane.xlu0 %421
          %v423 = vadd.f32 %v401, %v420
          %v424 = vadd.f32 %v402, %v422
          %vm425 = vcmask 7168
          %426 = vst.msk [vmem:[#allocation3] sm:$0xff] %vm425, %v423
          %427 = vst.msk [vmem:[#allocation3 + $0x8] sm:$0xff] %vm425, %v424
          %428 = vst.msk [vmem:[#allocation2] sm:$0xff] %vm425, %v391
          %429 = vst.msk [vmem:[#allocation2 + $0x8] sm:$0xff] %vm425, %v392
        $region36: #{tpu_custom_call.1} parent=31 // pred_fallthru
          _
        %p430 = scmp.eq.s32.totalorder %s23, 1
        // Predicated region
        $region41: #{tpu_custom_call.1} parent=31 // pred_check
          %p431 = pneg %p430
        $region42: #{tpu_custom_call.1} parent=31 // pred_check_branch
          %433 = sbr.rel (%p431) target = $region44
        $region43: #{tpu_custom_call.1} parent=31 // pred_region
          %v434 = vld [vmem:[#allocation2] sm:$0xff]
          %v435 = vld [vmem:[#allocation2 + $0x8] sm:$0xff]
          %v436 = vld [vmem:[#allocation3] sm:$0xff]
          %v437 = vld [vmem:[#allocation3 + $0x8] sm:$0xff]
          %v438 = vlog2.pop %v436
          %v439 = vmul.f32 %v438, 0.6931472
          %v440 = vlog2.pop %v437
          %v441 = vmul.f32 %v440, 0.6931472
          %v442 = vadd.f32 %v434, %v439
          %v443 = vadd.f32 %v435, %v441
          %445 = vset.pattern.permute.xlu0 0
          %446 = vperm.xlu0 %445, %v442
          %v447 = vpop.permute.xlu0 %446
          %450 = vset.pattern.permute.xlu0 0
          %451 = vperm.xlu0 %450, %v443
          %v452 = vpop.permute.xlu0 %451
          %v454 = vsub.f32 %v366, %v447
          %v455 = vsub.f32 %v369, %v452
          %456 = vst [vmem:[%s214] sm:$0xff] %v454
          %457 = vst [vmem:[%s214 + $0x8] sm:$0xff] %v455
        $region44: #{tpu_custom_call.1} parent=31 // pred_fallthru
          _
        %s458 = sand.u32 %s126, 1
        %s459 = scalar_lea.sflag [#allocation5], %s458
        %s460 = sand.u32 %s126, 1
        %s461 = smul.addr %s460, 16
        %s462 = scalar_lea.vmem [#allocation4], %s461
        // Predicated region
        $region45: #{tpu_custom_call.1} parent=31 // pred_check
          %p463 = pneg %p136
        $region46: #{tpu_custom_call.1} parent=31 // pred_check_branch
          %465 = sbr.rel (%p463) target = $region48
        $region47: #{tpu_custom_call.1} parent=31 // pred_region
          %s466 = smul.u32 %s24, %s23
          %s467 = smul.u32 2, %s22
          %s469 = ssub.s32 256, 256
          %470 = vsyncadd %s459, %s469
          %s471 = sadd.s32 %s466, %s467
          %s472 = smul.addr %s471, 128
          %s473 = scalar_lea.hbm %s3, %s472
          %s474 = sshll.u32 %s462, 4
          %s475 = int_to_ptr.vmem [resolvable:$true] %s474
          %480 = dma.vmem_to_hbm [thread:$0]  %s475, 256, %s473, %s459, 128, 128, 8
        $region48: #{tpu_custom_call.1} parent=31 // pred_fallthru
          _
      $region32: #{tpu_custom_call.1} parent=5 // pred_fallthru
        _
      %p481 = scmp.le.s32.totalorder 2, %s12
      // Predicated region
      $region49: #{tpu_custom_call.1} parent=5 // pred_check
        %p482 = pneg %p481
      $region50: #{tpu_custom_call.1} parent=5 // pred_check_branch
        %484 = sbr.rel (%p482) target = $region52
      $region51: #{tpu_custom_call.1} parent=5 // pred_region
        %s485 = ssub.s32 %s12, 2
        // Predicated region
        $region53: #{tpu_custom_call.1} parent=51 // pred_check
          %p486 = pneg %p142
        $region54: #{tpu_custom_call.1} parent=51 // pred_check_branch
          %488 = sbr.rel (%p486) target = $region56
        $region55: #{tpu_custom_call.1} parent=51 // pred_region
          %s489 = sand.u32 %s127, 1
          %s490 = scalar_lea.sflag [#allocation5], %s489
          %s491 = sand.u32 %s127, 1
          %s492 = smul.addr %s491, 16
          %s493 = scalar_lea.vmem [#allocation4], %s492
          %494 = dma.done %s490, 256
        $region56: #{tpu_custom_call.1} parent=51 // pred_fallthru
          _
      $region52: #{tpu_custom_call.1} parent=5 // pred_fallthru
        _
    $region6: #{tpu_custom_call.1} parent=1 // loop_footer
      %s16 = sadd.s32 1, %s12
    $region7: #{tpu_custom_call.1} parent=1 // loop_footer_branch
      %11 = sbr.rel target = $region3
    $region8: #{tpu_custom_call.1} parent=1 // loop_exit
      _
    %495 = vsyncpa [#allocation5], 1
    %s496 = scalar_lea.sflag [#allocation5], 1
    %497 = vsyncpa %s496, 1

</llo_original>
